<compile_context>
chip_gen: v6e
topology: v6e:2x2x1
jax: 0.10.0
libtpu: 0.0.40
codegen_flags: <defaults>
</compile_context>

<pallas_src>
import functools

import jax
import jax.numpy as jnp
from jax.experimental import pallas as pl
from jax.experimental.pallas import tpu as pltpu


def _round_up(x, m):
    return ((x + m - 1) // m) * m


def _vector_btd_kernel(idx_ref, gt_ref, out_ref, *, num_models):
    """One batch tile.

    idx_ref : (8, TILE_B) int32   rows 0/1/2 = i/j/k indices, rows 3..7 unused
    gt_ref  : (nm_rows, nm_cols) f32, resident across grid steps
              rows [:num_models] = G^T (G = u @ v^T),
              row  [num_models]  = log_lambda^T, rest zero padding
    out_ref : (8, TILE_B) f32     rows 0/1/2 = [tie, score_j, score_k]
    """
    nm_rows, nm_cols = gt_ref.shape
    tile_b = idx_ref.shape[1]

    i_row = idx_ref[0:1, :]
    j_row = idx_ref[1:2, :]
    k_row = idx_ref[2:3, :]

    # One-hot of i on the (padded) contraction axis, then a single MXU matmul
    # gathers both G[i_b, :] and log_lambda[i_b] for the whole tile:
    #   rows[m, b] = G[i_b, m] (m < nm); rows[num_models, b] = log_lambda[i_b]
    iota_c = jax.lax.broadcasted_iota(jnp.int32, (nm_cols, tile_b), 0)
    oh_i = (i_row == iota_c).astype(jnp.float32)            # (nm_cols, TILE_B)
    rows = jnp.dot(gt_ref[...], oh_i,
                   preferred_element_type=jnp.float32,
                   precision=jax.lax.Precision.HIGHEST)      # (nm_rows, TILE_B)

    # score_j[b] = G[i_b, j_b]; score_k[b] = G[i_b, k_b].
    # j/k < num_models, so the log_lambda row / zero padding rows never match.
    iota_r = jax.lax.broadcasted_iota(jnp.int32, (nm_rows, tile_b), 0)
    score_j = jnp.sum(jnp.where(j_row == iota_r, rows, 0.0),
                      axis=0, keepdims=True)                 # (1, TILE_B)
    score_k = jnp.sum(jnp.where(k_row == iota_r, rows, 0.0),
                      axis=0, keepdims=True)                 # (1, TILE_B)
    ll_i = rows[num_models:num_models + 1, :]                # (1, TILE_B)
    tie = ll_i + 0.5 * (score_j + score_k)

    out_ref[0:1, :] = tie
    out_ref[1:2, :] = score_j
    out_ref[2:3, :] = score_k
    out_ref[3:8, :] = jnp.zeros((5, tile_b), jnp.float32)


def vector_btd_forward(i_idx, j_idx, k_idx, u, v, log_lambda, *, tile_b=8192):
    """Pallas wrapper. Returns (B, 3) float32 logits [tie, score_j, score_k]."""
    num_models, _ = u.shape
    B = i_idx.shape[0]

    # Gram matrix (transposed) + folded log_lambda, computed once in plain XLA,
    # zero-padded to (8, 128)-aligned shape so the resident table is vreg-clean.
    gt = jnp.dot(v.astype(jnp.float32), u.astype(jnp.float32).T,
                 precision=jax.lax.Precision.HIGHEST)        # (nm, nm) = G^T
    gt_aug = jnp.concatenate(
        [gt, log_lambda.astype(jnp.float32).reshape(1, num_models)], axis=0)
    nm_rows = _round_up(num_models + 1, 8)
    nm_cols = _round_up(num_models, 128)
    gt_pad = jnp.zeros((nm_rows, nm_cols), jnp.float32)
    gt_pad = gt_pad.at[:num_models + 1, :num_models].set(gt_aug)

    # Tile the batch on the lane axis; clamp the tile so small batches do not
    # waste compute, keep it a multiple of 128.
    tile_b = max(128, min(_round_up(tile_b, 128), _round_up(B, 128)))
    b_pad = pl.cdiv(B, tile_b) * tile_b

    # Pack i/j/k into one 8-sublane int32 block (single aligned DMA per step).
    idx = jnp.zeros((8, b_pad), jnp.int32)
    idx = idx.at[0, :B].set(i_idx.astype(jnp.int32).reshape(-1))
    idx = idx.at[1, :B].set(j_idx.astype(jnp.int32).reshape(-1))
    idx = idx.at[2, :B].set(k_idx.astype(jnp.int32).reshape(-1))

    grid = (b_pad // tile_b,)
    idx_spec = pl.BlockSpec((8, tile_b), lambda b: (0, b))
    table_spec = pl.BlockSpec((nm_rows, nm_cols), lambda b: (0, 0))
    out_spec = pl.BlockSpec((8, tile_b), lambda b: (0, b))

    flops_per_step = (2 * nm_rows * nm_cols * tile_b      # gather matmul
                      + 2 * nm_cols * tile_b              # one-hot cmp + cast
                      + 10 * nm_rows * tile_b)            # selects + reductions
    bytes_per_step = (8 * tile_b * 4                      # packed index block
                      + 8 * tile_b * 4)                   # padded output block

    out = pl.pallas_call(
        functools.partial(_vector_btd_kernel, num_models=num_models),
        out_shape=jax.ShapeDtypeStruct((8, b_pad), jnp.float32),
        grid_spec=pltpu.PrefetchScalarGridSpec(
            num_scalar_prefetch=0,
            grid=grid,
            in_specs=[idx_spec, table_spec],
            out_specs=out_spec,
        ),
        compiler_params=pltpu.CompilerParams(
            dimension_semantics=("parallel",),
            vmem_limit_bytes=32 * 1024 * 1024,
        ),
        cost_estimate=pl.CostEstimate(
            flops=grid[0] * flops_per_step,
            transcendentals=0,
            bytes_accessed=grid[0] * bytes_per_step + nm_rows * nm_cols * 4,
        ),
    )(idx, gt_pad)

    return out[:3, :B].T   # (B, 3)


def _reference_forward(i_idx, j_idx, k_idx, u, v, log_lambda):
    u_i = u[i_idx]
    v_j = v[j_idx]
    v_k = v[k_idx]
    score_j = jnp.sum(u_i * v_j, axis=-1)
    score_k = jnp.sum(u_i * v_k, axis=-1)
    ll_i = log_lambda[i_idx][:, 0]
    tie = ll_i + 0.5 * (score_j + score_k)
    return jnp.stack([tie, score_j, score_k], axis=1)


if __name__ == "__main__":
    num_models, d, batch = 16, 32, 8

    key = jax.random.PRNGKey(0)
    k_u, k_v, k_i, k_j, k_k = jax.random.split(key, 5)

    # Deterministic parameter init mirroring the PyTorch __init__:
    #   u, v ~ Normal(0, 0.1); log_lambda = 0
    u = 0.1 * jax.random.normal(k_u, (num_models, d), dtype=jnp.float32)
    v = 0.1 * jax.random.normal(k_v, (num_models, d), dtype=jnp.float32)
    log_lambda = jnp.zeros((num_models, 1), dtype=jnp.float32)

    i_idx = jax.random.randint(k_i, (batch,), 0, num_models, dtype=jnp.int32)
    j_idx = jax.random.randint(k_j, (batch,), 0, num_models, dtype=jnp.int32)
    k_idx = jax.random.randint(k_k, (batch,), 0, num_models, dtype=jnp.int32)

    logits = vector_btd_forward(i_idx, j_idx, k_idx, u, v, log_lambda)
    logits = jax.block_until_ready(logits)

    ref = _reference_forward(i_idx, j_idx, k_idx, u, v, log_lambda)
    assert logits.shape == (batch, 3)
    assert jnp.allclose(logits, ref, atol=1e-4, rtol=1e-4), (logits, ref)

    print("KERNEL_OK")
</pallas_src>

<mosaic_0001>
module attributes {stable_mosaic.version = 11 : i64} {
  func.func @_vector_btd_kernel(%arg0: i32, %arg1: memref<8x128xi32, #tpu.memory_space<vmem>>, %arg2: memref<24x128xf32, #tpu.memory_space<vmem>>, %arg3: memref<8x128xf32, #tpu.memory_space<vmem>>) attributes {dimension_semantics = [#tpu.dimension_semantics<parallel>], iteration_bounds = array<i64: 1>, scalar_prefetch = 0 : i64, scratch_operands = 0 : i64, tpu.core_type = #tpu.core_type<tc>, window_params = [{transform_indices = @transform_0, window_bounds = array<i64: 8, 128>}, {pipeline_mode = #tpu.pipeline_mode<synchronous>, transform_indices = @transform_1, window_bounds = array<i64: 24, 128>}, {transform_indices = @transform_2, window_bounds = array<i64: 8, 128>}]} {
    %c0 = arith.constant 0 : index
    %c0_0 = arith.constant 0 : index
    %0 = vector.load %arg1[%c0, %c0_0] : memref<8x128xi32, #tpu.memory_space<vmem>>, vector<1x128xi32>
    %c1 = arith.constant 1 : index
    %c0_1 = arith.constant 0 : index
    %1 = vector.load %arg1[%c1, %c0_1] : memref<8x128xi32, #tpu.memory_space<vmem>>, vector<1x128xi32>
    %c2 = arith.constant 2 : index
    %c0_2 = arith.constant 0 : index
    %2 = vector.load %arg1[%c2, %c0_2] : memref<8x128xi32, #tpu.memory_space<vmem>>, vector<1x128xi32>
    %3 = tpu.iota {dimensions = array<i32: 0>} : vector<128x128xi32>
    %4 = vector.broadcast %0 : vector<1x128xi32> to vector<128x128xi32>
    %5 = arith.cmpi eq, %4, %3 : vector<128x128xi32>
    %6 = arith.extui %5 : vector<128x128xi1> to vector<128x128xi32>
    %7 = arith.sitofp %6 : vector<128x128xi32> to vector<128x128xf32>
    %c0_3 = arith.constant 0 : index
    %c0_4 = arith.constant 0 : index
    %8 = vector.load %arg2[%c0_3, %c0_4] : memref<24x128xf32, #tpu.memory_space<vmem>>, vector<24x128xf32>
    %cst = arith.constant dense<0.000000e+00> : vector<24x128xf32>
    %9 = tpu.matmul %8, %7, %cst {dimension_numbers = #tpu.dot_dimension_numbers<[1], [0], [0], [1], [0, 0, 1, 1], [], []>, precision = #tpu.contract_precision<fp32>} : vector<24x128xf32>, vector<128x128xf32>, vector<24x128xf32> -> vector<24x128xf32>
    %10 = tpu.iota {dimensions = array<i32: 0>} : vector<24x128xi32>
    %11 = vector.broadcast %1 : vector<1x128xi32> to vector<24x128xi32>
    %12 = arith.cmpi eq, %11, %10 : vector<24x128xi32>
    %cst_5 = arith.constant 0.000000e+00 : f32
    %13 = vector.broadcast %cst_5 : f32 to vector<24x128xf32>
    %14 = arith.select %12, %9, %13 : vector<24x128xi1>, vector<24x128xf32>
    %cst_6 = arith.constant dense<0.000000e+00> : vector<128xf32>
    %15 = vector.multi_reduction <add>, %14, %cst_6 [0] : vector<24x128xf32> to vector<128xf32>
    %16 = vector.shape_cast %15 : vector<128xf32> to vector<1x128xf32>
    %17 = vector.broadcast %2 : vector<1x128xi32> to vector<24x128xi32>
    %18 = arith.cmpi eq, %17, %10 : vector<24x128xi32>
    %cst_7 = arith.constant 0.000000e+00 : f32
    %19 = vector.broadcast %cst_7 : f32 to vector<24x128xf32>
    %20 = arith.select %18, %9, %19 : vector<24x128xi1>, vector<24x128xf32>
    %cst_8 = arith.constant dense<0.000000e+00> : vector<128xf32>
    %21 = vector.multi_reduction <add>, %20, %cst_8 [0] : vector<24x128xf32> to vector<128xf32>
    %22 = vector.shape_cast %21 : vector<128xf32> to vector<1x128xf32>
    %23 = vector.extract_strided_slice %9 {offsets = [16, 0], sizes = [1, 128], strides = [1, 1]} : vector<24x128xf32> to vector<1x128xf32>
    %24 = arith.addf %16, %22 : vector<1x128xf32>
    %cst_9 = arith.constant 5.000000e-01 : f32
    %25 = vector.broadcast %cst_9 : f32 to vector<1x128xf32>
    %26 = arith.mulf %25, %24 : vector<1x128xf32>
    %27 = arith.addf %23, %26 : vector<1x128xf32>
    %c0_10 = arith.constant 0 : index
    %c0_11 = arith.constant 0 : index
    %28 = vector.load %arg3[%c0_10, %c0_11] : memref<8x128xf32, #tpu.memory_space<vmem>>, vector<1x128xf32>
    tpu.vector_store %arg3[%c0_10, %c0_11], %27 {strides = array<i32>} : memref<8x128xf32, #tpu.memory_space<vmem>>, vector<1x128xf32>,
    %c1_12 = arith.constant 1 : index
    %c0_13 = arith.constant 0 : index
    %29 = vector.load %arg3[%c1_12, %c0_13] : memref<8x128xf32, #tpu.memory_space<vmem>>, vector<1x128xf32>
    tpu.vector_store %arg3[%c1_12, %c0_13], %16 {strides = array<i32>} : memref<8x128xf32, #tpu.memory_space<vmem>>, vector<1x128xf32>,
    %c2_14 = arith.constant 2 : index
    %c0_15 = arith.constant 0 : index
    %30 = vector.load %arg3[%c2_14, %c0_15] : memref<8x128xf32, #tpu.memory_space<vmem>>, vector<1x128xf32>
    tpu.vector_store %arg3[%c2_14, %c0_15], %22 {strides = array<i32>} : memref<8x128xf32, #tpu.memory_space<vmem>>, vector<1x128xf32>,
    %cst_16 = arith.constant 0.000000e+00 : f32
    %31 = vector.broadcast %cst_16 : f32 to vector<5x128xf32>
    %c3 = arith.constant 3 : index
    %c0_17 = arith.constant 0 : index
    %32 = vector.load %arg3[%c3, %c0_17] : memref<8x128xf32, #tpu.memory_space<vmem>>, vector<5x128xf32>
    tpu.vector_store %arg3[%c3, %c0_17], %31 {strides = array<i32>} : memref<8x128xf32, #tpu.memory_space<vmem>>, vector<5x128xf32>,
    return
  }
  func.func @transform_0(%arg0: i32) -> (i32, i32) {
    %c0_i32 = arith.constant 0 : i32
    %c0_i32_0 = arith.constant 0 : i32
    return %c0_i32, %arg0 : i32, i32
  }
  func.func @transform_1(%arg0: i32) -> (i32, i32) {
    %c0_i32 = arith.constant 0 : i32
    %c0_i32_0 = arith.constant 0 : i32
    %c0_i32_1 = arith.constant 0 : i32
    return %c0_i32, %c0_i32_0 : i32, i32
  }
  func.func @transform_2(%arg0: i32) -> (i32, i32) {
    %c0_i32 = arith.constant 0 : i32
    %c0_i32_0 = arith.constant 0 : i32
    return %c0_i32, %arg0 : i32, i32
  }
}

</mosaic_0001>

<llo_original>
// kernel: tpu_custom_call.1
$region0: #{tpu_custom_call.1}
  #allocation0 [shape = 'u32[]', space=smem, size = 0x4, offset = 0x4, fixed_abs, tag = 'smem constant byte address 0x4 - core index']
  #allocation1 [shape = 'u32[144,128]{1,0:T(1,128)}', space=vmem, size = 0x12000, scoped, tag = 'internal scratch']
  %s0 = inlined_call_operand.hbm [shape: s32[8,128], index: 0, kind: input, shape index: {}]
  %s1 = inlined_call_operand.hbm [shape: f32[24,128], index: 1, kind: input, shape index: {}]
  %s2 = inlined_call_operand.hbm [shape: f32[8,128], index: 2, kind: output, shape index: {}]
  %s3 = sld [smem:[#allocation0]]
  $region26: #{tpu_custom_call.1} parent=0
    _
  %s5 = ssub.s32 1, %s3
  %s6 = scalar_select 0, %s5, %s3
  $region1: #{tpu_custom_call.1} parent=0
    #allocation2 [shape = 'u8[4096]{0}', space=vmem, size = 0x1000, scoped, tag = 'input window, operand 0, single buffered']
    #allocation3 [shape = 's32[1]{0}', space=sflag, size = 0x4, scoped, tag = 'scoped memory for tpu_custom_call.1']
    #allocation4 [shape = 's32[1]{0}', space=sflag, size = 0x4, scoped, tag = 'scoped memory for tpu_custom_call.1']
    #allocation5 [shape = 'u8[12288]{0}', space=vmem, size = 0x3000, scoped, tag = 'input window, operand 1, single buffered']
    #allocation6 [shape = 's32[1]{0}', space=sflag, size = 0x4, scoped, tag = 'scoped memory for tpu_custom_call.1']
    #allocation7 [shape = 'u8[4096]{0}', space=vmem, size = 0x1000, scoped, tag = 'output window, operand 0, single buffered']
    %7 = vsyncpa [#allocation3], 0
    %8 = vsyncpa [#allocation6], 0
    %9 = vsyncpa [#allocation4], 0
    // Predicated region
    $region2: #{tpu_custom_call.1} parent=1 // pred_check
      _
    $region3: #{tpu_custom_call.1} parent=1 // pred_check_branch
      %11 = sbr.rel (0) target = $region5
    $region4: #{tpu_custom_call.1} parent=1 // pred_region
      %s13 = ssub.s32 128, 128
      %14 = vsyncadd [#allocation3], %s13
      %s16 = sshll.u32 [#allocation2], 4
      %s17 = int_to_ptr.vmem [resolvable:$true] %s16
      %19 = dma.hbm_to_vmem [thread:$0]  %s0, 128, %s17, [#allocation3]
    $region5: #{tpu_custom_call.1} parent=1 // pred_fallthru
      _
    // Predicated region
    $region6: #{tpu_custom_call.1} parent=1 // pred_check
      _
    $region7: #{tpu_custom_call.1} parent=1 // pred_check_branch
      %21 = sbr.rel (0) target = $region9
    $region8: #{tpu_custom_call.1} parent=1 // pred_region
      %s23 = ssub.s32 384, 384
      %24 = vsyncadd [#allocation6], %s23
      %s25 = sshll.u32 [#allocation5], 4
      %s26 = int_to_ptr.vmem [resolvable:$true] %s25
      %31 = dma.hbm_to_vmem [thread:$0]  %s1, 384, %s26, [#allocation6], 128, 128, 8
    $region9: #{tpu_custom_call.1} parent=1 // pred_fallthru
      _
    // Predicated region
    $region10: #{tpu_custom_call.1} parent=1 // pred_check
      _
    $region11: #{tpu_custom_call.1} parent=1 // pred_check_branch
      %33 = sbr.rel (0) target = $region13
    $region12: #{tpu_custom_call.1} parent=1 // pred_region
      %34 = dma.done [#allocation3], 128
    $region13: #{tpu_custom_call.1} parent=1 // pred_fallthru
      _
    // Predicated region
    $region14: #{tpu_custom_call.1} parent=1 // pred_check
      _
    $region15: #{tpu_custom_call.1} parent=1 // pred_check_branch
      %36 = sbr.rel (0) target = $region17
    $region16: #{tpu_custom_call.1} parent=1 // pred_region
      %37 = dma.done [#allocation6], 384
    $region17: #{tpu_custom_call.1} parent=1 // pred_fallthru
      _
    %v38 = vld [vmem:[#allocation2] sm:$0x1]
    %v39 = vld [vmem:[#allocation2 + $0x1] sm:$0x1]
    %v40 = vld [vmem:[#allocation2 + $0x2] sm:$0x1]
    %v41 = vlaneseq
    %v42 = vshrl.u32 %v41, 7
    %v43 = vadd.s32 %v42, 8
    %v44 = vadd.s32 %v42, 16
    %v45 = vadd.s32 %v42, 24
    %v46 = vadd.s32 %v42, 32
    %v47 = vadd.s32 %v42, 40
    %v48 = vadd.s32 %v42, 48
    %v49 = vadd.s32 %v42, 56
    %v50 = vadd.s32 %v42, 64
    %v51 = vadd.s32 %v42, 72
    %v52 = vadd.s32 %v42, 80
    %v53 = vadd.s32 %v42, 88
    %v54 = vadd.s32 %v42, 96
    %v55 = vadd.s32 %v42, 104
    %v56 = vadd.s32 %v42, 112
    %v57 = vadd.s32 %v42, 120
    %v58 = vlaneseq
    %v59 = vshrl.u32 %v58, 7
    %v60 = vsub.s32 0, %v59
    %v61 = vrot.slane %v38, %v60
    %vm62 = vcmp.eq.s32.totalorder %v61, %v42
    %vm63 = vcmp.eq.s32.totalorder %v61, %v43
    %vm64 = vcmp.eq.s32.totalorder %v61, %v44
    %vm65 = vcmp.eq.s32.totalorder %v61, %v45
    %vm66 = vcmp.eq.s32.totalorder %v61, %v46
    %vm67 = vcmp.eq.s32.totalorder %v61, %v47
    %vm68 = vcmp.eq.s32.totalorder %v61, %v48
    %vm69 = vcmp.eq.s32.totalorder %v61, %v49
    %vm70 = vcmp.eq.s32.totalorder %v61, %v50
    %vm71 = vcmp.eq.s32.totalorder %v61, %v51
    %vm72 = vcmp.eq.s32.totalorder %v61, %v52
    %vm73 = vcmp.eq.s32.totalorder %v61, %v53
    %vm74 = vcmp.eq.s32.totalorder %v61, %v54
    %vm75 = vcmp.eq.s32.totalorder %v61, %v55
    %vm76 = vcmp.eq.s32.totalorder %v61, %v56
    %vm77 = vcmp.eq.s32.totalorder %v61, %v57
    %v78 = vsel %vm62, 1, 0
    %v79 = vsel %vm63, 1, 0
    %v80 = vsel %vm64, 1, 0
    %v81 = vsel %vm65, 1, 0
    %v82 = vsel %vm66, 1, 0
    %v83 = vsel %vm67, 1, 0
    %v84 = vsel %vm68, 1, 0
    %v85 = vsel %vm69, 1, 0
    %v86 = vsel %vm70, 1, 0
    %v87 = vsel %vm71, 1, 0
    %v88 = vsel %vm72, 1, 0
    %v89 = vsel %vm73, 1, 0
    %v90 = vsel %vm74, 1, 0
    %v91 = vsel %vm75, 1, 0
    %v92 = vsel %vm76, 1, 0
    %v93 = vsel %vm77, 1, 0
    %v94 = vcvt.s32.f32 %v78
    %v95 = vcvt.s32.f32 %v79
    %v96 = vcvt.s32.f32 %v80
    %v97 = vcvt.s32.f32 %v81
    %v98 = vcvt.s32.f32 %v82
    %v99 = vcvt.s32.f32 %v83
    %v100 = vcvt.s32.f32 %v84
    %v101 = vcvt.s32.f32 %v85
    %v102 = vcvt.s32.f32 %v86
    %v103 = vcvt.s32.f32 %v87
    %v104 = vcvt.s32.f32 %v88
    %v105 = vcvt.s32.f32 %v89
    %v106 = vcvt.s32.f32 %v90
    %v107 = vcvt.s32.f32 %v91
    %v108 = vcvt.s32.f32 %v92
    %v109 = vcvt.s32.f32 %v93
    %v110 = vld [vmem:[#allocation5] sm:$0xff]
    %v111 = vld [vmem:[#allocation5 + $0x8] sm:$0xff]
    %v112 = vld [vmem:[#allocation5 + $0x10] sm:$0xff]
    %113 = vmatprep.subr.mxu0 0.0
    %v114 = vand.u32 %v109, 4294901760
    %115 = vmatpush1.msra.mxu0 %v114
    %116 = vmatprep.subr.mxu0 0.0
    %v117 = vand.u32 %v108, 4294901760
    %118 = vmatpush1.msra.mxu0 %v117
    %119 = vmatprep.subr.mxu0 0.0
    %v120 = vand.u32 %v107, 4294901760
    %121 = vmatpush1.msra.mxu0 %v120
    %122 = vmatprep.subr.mxu0 0.0
    %v123 = vand.u32 %v106, 4294901760
    %124 = vmatpush1.msra.mxu0 %v123
    %125 = vmatprep.subr.mxu0 0.0
    %v126 = vand.u32 %v105, 4294901760
    %127 = vmatpush1.msra.mxu0 %v126
    %128 = vmatprep.subr.mxu0 0.0
    %v129 = vand.u32 %v104, 4294901760
    %130 = vmatpush1.msra.mxu0 %v129
    %131 = vmatprep.subr.mxu0 0.0
    %v132 = vand.u32 %v103, 4294901760
    %133 = vmatpush1.msra.mxu0 %v132
    %134 = vmatprep.subr.mxu0 0.0
    %v135 = vand.u32 %v102, 4294901760
    %136 = vmatpush1.msra.mxu0 %v135
    %137 = vmatprep.subr.mxu0 0.0
    %v138 = vand.u32 %v101, 4294901760
    %139 = vmatpush1.msra.mxu0 %v138
    %140 = vmatprep.subr.mxu0 0.0
    %v141 = vand.u32 %v100, 4294901760
    %142 = vmatpush1.msra.mxu0 %v141
    %143 = vmatprep.subr.mxu0 0.0
    %v144 = vand.u32 %v99, 4294901760
    %145 = vmatpush1.msra.mxu0 %v144
    %146 = vmatprep.subr.mxu0 0.0
    %v147 = vand.u32 %v98, 4294901760
    %148 = vmatpush1.msra.mxu0 %v147
    %149 = vmatprep.subr.mxu0 0.0
    %v150 = vand.u32 %v97, 4294901760
    %151 = vmatpush1.msra.mxu0 %v150
    %152 = vmatprep.subr.mxu0 0.0
    %v153 = vand.u32 %v96, 4294901760
    %154 = vmatpush1.msra.mxu0 %v153
    %155 = vmatprep.subr.mxu0 0.0
    %v156 = vand.u32 %v95, 4294901760
    %157 = vmatpush1.msra.mxu0 %v156
    %158 = vmatprep.subr.mxu0 0.0
    %v159 = vand.u32 %v94, 4294901760
    %160 = vmatpush1.msra.mxu0 %v159
    %161 = vmatprep.subr.mxu0 0.0
    %162 = vmatpush2.msra.mxu0 0.0
    %163 = vmatprep.subr.mxu0 0.0
    %164 = vmatpush2.msra.mxu0 0.0
    %165 = vmatprep.subr.mxu0 0.0
    %166 = vmatpush2.msra.mxu0 0.0
    %167 = vmatprep.subr.mxu0 0.0
    %168 = vmatpush2.msra.mxu0 0.0
    %169 = vmatprep.subr.mxu0 0.0
    %170 = vmatpush2.msra.mxu0 0.0
    %171 = vmatprep.subr.mxu0 0.0
    %172 = vmatpush2.msra.mxu0 0.0
    %173 = vmatprep.subr.mxu0 0.0
    %174 = vmatpush2.msra.mxu0 0.0
    %175 = vmatprep.subr.mxu0 0.0
    %176 = vmatpush2.msra.mxu0 0.0
    %177 = vmatprep.subr.mxu0 0.0
    %178 = vmatpush2.msra.mxu0 0.0
    %179 = vmatprep.subr.mxu0 0.0
    %180 = vmatpush2.msra.mxu0 0.0
    %181 = vmatprep.subr.mxu0 0.0
    %182 = vmatpush2.msra.mxu0 0.0
    %183 = vmatprep.subr.mxu0 0.0
    %184 = vmatpush2.msra.mxu0 0.0
    %185 = vmatprep.subr.mxu0 0.0
    %186 = vmatpush2.msra.mxu0 0.0
    %187 = vmatprep.subr.mxu0 0.0
    %188 = vmatpush2.msra.mxu0 0.0
    %189 = vmatprep.subr.mxu0 0.0
    %190 = vmatpush2.msra.mxu0 0.0
    %191 = vmatprep.subr.mxu0 0.0
    %192 = vmatpush2.msra.mxu0 0.0
    %193 = vmatprep.mubr.f32.mxu0 0.0
    %v194 = vand.u32 %v110, 4294901760
    %v195 = vsub.f32 %v110, %v194
    %v196 = vand.u32 %v195, 4294901760
    %v197 = vsub.f32 %v195, %v196
    %v198 = vand.u32 %v197, 4294901760
    %199 = vmatmul.mubr.f32.gmra.mxu0 %v198
    %v200 = vpop.f32.mrf.mxu0
    %v201 = vadd.f32 0.0, %v200
    %v202 = vpop.f32.mrf.mxu0
    %203 = vmatprep.mubr.f32.mxu0 0.0
    %v204 = vand.u32 %v111, 4294901760
    %v205 = vsub.f32 %v111, %v204
    %v206 = vand.u32 %v205, 4294901760
    %v207 = vsub.f32 %v205, %v206
    %v208 = vand.u32 %v207, 4294901760
    %209 = vmatmul.mubr.f32.gmra.mxu0 %v208
    %v210 = vpop.f32.mrf.mxu0
    %v211 = vadd.f32 0.0, %v210
    %v212 = vpop.f32.mrf.mxu0
    %213 = vmatprep.mubr.f32.mxu0 0.0
    %v214 = vand.u32 %v112, 4294901760
    %v215 = vsub.f32 %v112, %v214
    %v216 = vand.u32 %v215, 4294901760
    %v217 = vsub.f32 %v215, %v216
    %v218 = vand.u32 %v217, 4294901760
    %219 = vmatmul.mubr.f32.gmra.mxu0 %v218
    %v220 = vpop.f32.mrf.mxu0
    %v221 = vadd.f32 0.0, %v220
    %v222 = vpop.f32.mrf.mxu0
    %223 = vdwg.mxu0
    %224 = vmatprep.subr.mxu0 0.0
    %v225 = vand.u32 %v109, 4294901760
    %v226 = vsub.f32 %v109, %v225
    %v227 = vand.u32 %v226, 4294901760
    %v228 = vsub.f32 %v226, %v227
    %v229 = vand.u32 %v228, 4294901760
    %230 = vmatpush1.msra.mxu0 %v229
    %231 = vmatprep.subr.mxu0 0.0
    %v232 = vand.u32 %v108, 4294901760
    %v233 = vsub.f32 %v108, %v232
    %v234 = vand.u32 %v233, 4294901760
    %v235 = vsub.f32 %v233, %v234
    %v236 = vand.u32 %v235, 4294901760
    %237 = vmatpush1.msra.mxu0 %v236
    %238 = vmatprep.subr.mxu0 0.0
    %v239 = vand.u32 %v107, 4294901760
    %v240 = vsub.f32 %v107, %v239
    %v241 = vand.u32 %v240, 4294901760
    %v242 = vsub.f32 %v240, %v241
    %v243 = vand.u32 %v242, 4294901760
    %244 = vmatpush1.msra.mxu0 %v243
    %245 = vmatprep.subr.mxu0 0.0
    %v246 = vand.u32 %v106, 4294901760
    %v247 = vsub.f32 %v106, %v246
    %v248 = vand.u32 %v247, 4294901760
    %v249 = vsub.f32 %v247, %v248
    %v250 = vand.u32 %v249, 4294901760
    %251 = vmatpush1.msra.mxu0 %v250
    %252 = vmatprep.subr.mxu0 0.0
    %v253 = vand.u32 %v105, 4294901760
    %v254 = vsub.f32 %v105, %v253
    %v255 = vand.u32 %v254, 4294901760
    %v256 = vsub.f32 %v254, %v255
    %v257 = vand.u32 %v256, 4294901760
    %258 = vmatpush1.msra.mxu0 %v257
    %259 = vmatprep.subr.mxu0 0.0
    %v260 = vand.u32 %v104, 4294901760
    %v261 = vsub.f32 %v104, %v260
    %v262 = vand.u32 %v261, 4294901760
    %v263 = vsub.f32 %v261, %v262
    %v264 = vand.u32 %v263, 4294901760
    %265 = vmatpush1.msra.mxu0 %v264
    %266 = vmatprep.subr.mxu0 0.0
    %v267 = vand.u32 %v103, 4294901760
    %v268 = vsub.f32 %v103, %v267
    %v269 = vand.u32 %v268, 4294901760
    %v270 = vsub.f32 %v268, %v269
    %v271 = vand.u32 %v270, 4294901760
    %272 = vmatpush1.msra.mxu0 %v271
    %273 = vmatprep.subr.mxu0 0.0
    %v274 = vand.u32 %v102, 4294901760
    %v275 = vsub.f32 %v102, %v274
    %v276 = vand.u32 %v275, 4294901760
    %v277 = vsub.f32 %v275, %v276
    %v278 = vand.u32 %v277, 4294901760
    %279 = vmatpush1.msra.mxu0 %v278
    %280 = vmatprep.subr.mxu0 0.0
    %v281 = vand.u32 %v101, 4294901760
    %v282 = vsub.f32 %v101, %v281
    %v283 = vand.u32 %v282, 4294901760
    %v284 = vsub.f32 %v282, %v283
    %v285 = vand.u32 %v284, 4294901760
    %286 = vmatpush1.msra.mxu0 %v285
    %287 = vmatprep.subr.mxu0 0.0
    %v288 = vand.u32 %v100, 4294901760
    %v289 = vsub.f32 %v100, %v288
    %v290 = vand.u32 %v289, 4294901760
    %v291 = vsub.f32 %v289, %v290
    %v292 = vand.u32 %v291, 4294901760
    %293 = vmatpush1.msra.mxu0 %v292
    %294 = vmatprep.subr.mxu0 0.0
    %v295 = vand.u32 %v99, 4294901760
    %v296 = vsub.f32 %v99, %v295
    %v297 = vand.u32 %v296, 4294901760
    %v298 = vsub.f32 %v296, %v297
    %v299 = vand.u32 %v298, 4294901760
    %300 = vmatpush1.msra.mxu0 %v299
    %301 = vmatprep.subr.mxu0 0.0
    %v302 = vand.u32 %v98, 4294901760
    %v303 = vsub.f32 %v98, %v302
    %v304 = vand.u32 %v303, 4294901760
    %v305 = vsub.f32 %v303, %v304
    %v306 = vand.u32 %v305, 4294901760
    %307 = vmatpush1.msra.mxu0 %v306
    %308 = vmatprep.subr.mxu0 0.0
    %v309 = vand.u32 %v97, 4294901760
    %v310 = vsub.f32 %v97, %v309
    %v311 = vand.u32 %v310, 4294901760
    %v312 = vsub.f32 %v310, %v311
    %v313 = vand.u32 %v312, 4294901760
    %314 = vmatpush1.msra.mxu0 %v313
    %315 = vmatprep.subr.mxu0 0.0
    %v316 = vand.u32 %v96, 4294901760
    %v317 = vsub.f32 %v96, %v316
    %v318 = vand.u32 %v317, 4294901760
    %v319 = vsub.f32 %v317, %v318
    %v320 = vand.u32 %v319, 4294901760
    %321 = vmatpush1.msra.mxu0 %v320
    %322 = vmatprep.subr.mxu0 0.0
    %v323 = vand.u32 %v95, 4294901760
    %v324 = vsub.f32 %v95, %v323
    %v325 = vand.u32 %v324, 4294901760
    %v326 = vsub.f32 %v324, %v325
    %v327 = vand.u32 %v326, 4294901760
    %328 = vmatpush1.msra.mxu0 %v327
    %329 = vmatprep.subr.mxu0 0.0
    %v330 = vand.u32 %v94, 4294901760
    %v331 = vsub.f32 %v94, %v330
    %v332 = vand.u32 %v331, 4294901760
    %v333 = vsub.f32 %v331, %v332
    %v334 = vand.u32 %v333, 4294901760
    %335 = vmatpush1.msra.mxu0 %v334
    %336 = vmatprep.subr.mxu0 0.0
    %337 = vmatpush2.msra.mxu0 0.0
    %338 = vmatprep.subr.mxu0 0.0
    %339 = vmatpush2.msra.mxu0 0.0
    %340 = vmatprep.subr.mxu0 0.0
    %341 = vmatpush2.msra.mxu0 0.0
    %342 = vmatprep.subr.mxu0 0.0
    %343 = vmatpush2.msra.mxu0 0.0
    %344 = vmatprep.subr.mxu0 0.0
    %345 = vmatpush2.msra.mxu0 0.0
    %346 = vmatprep.subr.mxu0 0.0
    %347 = vmatpush2.msra.mxu0 0.0
    %348 = vmatprep.subr.mxu0 0.0
    %349 = vmatpush2.msra.mxu0 0.0
    %350 = vmatprep.subr.mxu0 0.0
    %351 = vmatpush2.msra.mxu0 0.0
    %352 = vmatprep.subr.mxu0 0.0
    %353 = vmatpush2.msra.mxu0 0.0
    %354 = vmatprep.subr.mxu0 0.0
    %355 = vmatpush2.msra.mxu0 0.0
    %356 = vmatprep.subr.mxu0 0.0
    %357 = vmatpush2.msra.mxu0 0.0
    %358 = vmatprep.subr.mxu0 0.0
    %359 = vmatpush2.msra.mxu0 0.0
    %360 = vmatprep.subr.mxu0 0.0
    %361 = vmatpush2.msra.mxu0 0.0
    %362 = vmatprep.subr.mxu0 0.0
    %363 = vmatpush2.msra.mxu0 0.0
    %364 = vmatprep.subr.mxu0 0.0
    %365 = vmatpush2.msra.mxu0 0.0
    %366 = vmatprep.subr.mxu0 0.0
    %367 = vmatpush2.msra.mxu0 0.0
    %368 = vmatprep.mubr.f32.mxu0 0.0
    %v369 = vand.u32 %v110, 4294901760
    %370 = vmatmul.mubr.f32.gmra.mxu0 %v369
    %v371 = vpop.f32.mrf.mxu0
    %v372 = vadd.f32 %v201, %v371
    %v373 = vpop.f32.mrf.mxu0
    %374 = vmatprep.mubr.f32.mxu0 0.0
    %v375 = vand.u32 %v111, 4294901760
    %376 = vmatmul.mubr.f32.gmra.mxu0 %v375
    %v377 = vpop.f32.mrf.mxu0
    %v378 = vadd.f32 %v211, %v377
    %v379 = vpop.f32.mrf.mxu0
    %380 = vmatprep.mubr.f32.mxu0 0.0
    %v381 = vand.u32 %v112, 4294901760
    %382 = vmatmul.mubr.f32.gmra.mxu0 %v381
    %v383 = vpop.f32.mrf.mxu0
    %v384 = vadd.f32 %v221, %v383
    %v385 = vpop.f32.mrf.mxu0
    %386 = vdwg.mxu0
    %387 = vmatprep.subr.mxu0 0.0
    %v388 = vand.u32 %v109, 4294901760
    %v389 = vsub.f32 %v109, %v388
    %390 = vmatpush1.msra.mxu0 %v389
    %391 = vmatprep.subr.mxu0 0.0
    %v392 = vand.u32 %v108, 4294901760
    %v393 = vsub.f32 %v108, %v392
    %394 = vmatpush1.msra.mxu0 %v393
    %395 = vmatprep.subr.mxu0 0.0
    %v396 = vand.u32 %v107, 4294901760
    %v397 = vsub.f32 %v107, %v396
    %398 = vmatpush1.msra.mxu0 %v397
    %399 = vmatprep.subr.mxu0 0.0
    %v400 = vand.u32 %v106, 4294901760
    %v401 = vsub.f32 %v106, %v400
    %402 = vmatpush1.msra.mxu0 %v401
    %403 = vmatprep.subr.mxu0 0.0
    %v404 = vand.u32 %v105, 4294901760
    %v405 = vsub.f32 %v105, %v404
    %406 = vmatpush1.msra.mxu0 %v405
    %407 = vmatprep.subr.mxu0 0.0
    %v408 = vand.u32 %v104, 4294901760
    %v409 = vsub.f32 %v104, %v408
    %410 = vmatpush1.msra.mxu0 %v409
    %411 = vmatprep.subr.mxu0 0.0
    %v412 = vand.u32 %v103, 4294901760
    %v413 = vsub.f32 %v103, %v412
    %414 = vmatpush1.msra.mxu0 %v413
    %415 = vmatprep.subr.mxu0 0.0
    %v416 = vand.u32 %v102, 4294901760
    %v417 = vsub.f32 %v102, %v416
    %418 = vmatpush1.msra.mxu0 %v417
    %419 = vmatprep.subr.mxu0 0.0
    %v420 = vand.u32 %v101, 4294901760
    %v421 = vsub.f32 %v101, %v420
    %422 = vmatpush1.msra.mxu0 %v421
    %423 = vmatprep.subr.mxu0 0.0
    %v424 = vand.u32 %v100, 4294901760
    %v425 = vsub.f32 %v100, %v424
    %426 = vmatpush1.msra.mxu0 %v425
    %427 = vmatprep.subr.mxu0 0.0
    %v428 = vand.u32 %v99, 4294901760
    %v429 = vsub.f32 %v99, %v428
    %430 = vmatpush1.msra.mxu0 %v429
    %431 = vmatprep.subr.mxu0 0.0
    %v432 = vand.u32 %v98, 4294901760
    %v433 = vsub.f32 %v98, %v432
    %434 = vmatpush1.msra.mxu0 %v433
    %435 = vmatprep.subr.mxu0 0.0
    %v436 = vand.u32 %v97, 4294901760
    %v437 = vsub.f32 %v97, %v436
    %438 = vmatpush1.msra.mxu0 %v437
    %439 = vmatprep.subr.mxu0 0.0
    %v440 = vand.u32 %v96, 4294901760
    %v441 = vsub.f32 %v96, %v440
    %442 = vmatpush1.msra.mxu0 %v441
    %443 = vmatprep.subr.mxu0 0.0
    %v444 = vand.u32 %v95, 4294901760
    %v445 = vsub.f32 %v95, %v444
    %446 = vmatpush1.msra.mxu0 %v445
    %447 = vmatprep.subr.mxu0 0.0
    %v448 = vand.u32 %v94, 4294901760
    %v449 = vsub.f32 %v94, %v448
    %450 = vmatpush1.msra.mxu0 %v449
    %451 = vmatprep.subr.mxu0 0.0
    %452 = vmatpush2.msra.mxu0 0.0
    %453 = vmatprep.subr.mxu0 0.0
    %454 = vmatpush2.msra.mxu0 0.0
    %455 = vmatprep.subr.mxu0 0.0
    %456 = vmatpush2.msra.mxu0 0.0
    %457 = vmatprep.subr.mxu0 0.0
    %458 = vmatpush2.msra.mxu0 0.0
    %459 = vmatprep.subr.mxu0 0.0
    %460 = vmatpush2.msra.mxu0 0.0
    %461 = vmatprep.subr.mxu0 0.0
    %462 = vmatpush2.msra.mxu0 0.0
    %463 = vmatprep.subr.mxu0 0.0
    %464 = vmatpush2.msra.mxu0 0.0
    %465 = vmatprep.subr.mxu0 0.0
    %466 = vmatpush2.msra.mxu0 0.0
    %467 = vmatprep.subr.mxu0 0.0
    %468 = vmatpush2.msra.mxu0 0.0
    %469 = vmatprep.subr.mxu0 0.0
    %470 = vmatpush2.msra.mxu0 0.0
    %471 = vmatprep.subr.mxu0 0.0
    %472 = vmatpush2.msra.mxu0 0.0
    %473 = vmatprep.subr.mxu0 0.0
    %474 = vmatpush2.msra.mxu0 0.0
    %475 = vmatprep.subr.mxu0 0.0
    %476 = vmatpush2.msra.mxu0 0.0
    %477 = vmatprep.subr.mxu0 0.0
    %478 = vmatpush2.msra.mxu0 0.0
    %479 = vmatprep.subr.mxu0 0.0
    %480 = vmatpush2.msra.mxu0 0.0
    %481 = vmatprep.subr.mxu0 0.0
    %482 = vmatpush2.msra.mxu0 0.0
    %483 = vmatprep.mubr.f32.mxu0 0.0
    %v484 = vand.u32 %v110, 4294901760
    %v485 = vsub.f32 %v110, %v484
    %486 = vmatmul.mubr.f32.gmra.mxu0 %v485
    %v487 = vpop.f32.mrf.mxu0
    %v488 = vadd.f32 %v372, %v487
    %v489 = vpop.f32.mrf.mxu0
    %490 = vmatprep.mubr.f32.mxu0 0.0
    %v491 = vand.u32 %v111, 4294901760
    %v492 = vsub.f32 %v111, %v491
    %493 = vmatmul.mubr.f32.gmra.mxu0 %v492
    %v494 = vpop.f32.mrf.mxu0
    %v495 = vadd.f32 %v378, %v494
    %v496 = vpop.f32.mrf.mxu0
    %497 = vmatprep.mubr.f32.mxu0 0.0
    %v498 = vand.u32 %v112, 4294901760
    %v499 = vsub.f32 %v112, %v498
    %500 = vmatmul.mubr.f32.gmra.mxu0 %v499
    %v501 = vpop.f32.mrf.mxu0
    %v502 = vadd.f32 %v384, %v501
    %v503 = vpop.f32.mrf.mxu0
    %504 = vdwg.mxu0
    %505 = vmatprep.subr.mxu0 0.0
    %v506 = vand.u32 %v109, 4294901760
    %507 = vmatpush1.msra.mxu0 %v506
    %508 = vmatprep.subr.mxu0 0.0
    %v509 = vand.u32 %v108, 4294901760
    %510 = vmatpush1.msra.mxu0 %v509
    %511 = vmatprep.subr.mxu0 0.0
    %v512 = vand.u32 %v107, 4294901760
    %513 = vmatpush1.msra.mxu0 %v512
    %514 = vmatprep.subr.mxu0 0.0
    %v515 = vand.u32 %v106, 4294901760
    %516 = vmatpush1.msra.mxu0 %v515
    %517 = vmatprep.subr.mxu0 0.0
    %v518 = vand.u32 %v105, 4294901760
    %519 = vmatpush1.msra.mxu0 %v518
    %520 = vmatprep.subr.mxu0 0.0
    %v521 = vand.u32 %v104, 4294901760
    %522 = vmatpush1.msra.mxu0 %v521
    %523 = vmatprep.subr.mxu0 0.0
    %v524 = vand.u32 %v103, 4294901760
    %525 = vmatpush1.msra.mxu0 %v524
    %526 = vmatprep.subr.mxu0 0.0
    %v527 = vand.u32 %v102, 4294901760
    %528 = vmatpush1.msra.mxu0 %v527
    %529 = vmatprep.subr.mxu0 0.0
    %v530 = vand.u32 %v101, 4294901760
    %531 = vmatpush1.msra.mxu0 %v530
    %532 = vmatprep.subr.mxu0 0.0
    %v533 = vand.u32 %v100, 4294901760
    %534 = vmatpush1.msra.mxu0 %v533
    %535 = vmatprep.subr.mxu0 0.0
    %v536 = vand.u32 %v99, 4294901760
    %537 = vmatpush1.msra.mxu0 %v536
    %538 = vmatprep.subr.mxu0 0.0
    %v539 = vand.u32 %v98, 4294901760
    %540 = vmatpush1.msra.mxu0 %v539
    %541 = vmatprep.subr.mxu0 0.0
    %v542 = vand.u32 %v97, 4294901760
    %543 = vmatpush1.msra.mxu0 %v542
    %544 = vmatprep.subr.mxu0 0.0
    %v545 = vand.u32 %v96, 4294901760
    %546 = vmatpush1.msra.mxu0 %v545
    %547 = vmatprep.subr.mxu0 0.0
    %v548 = vand.u32 %v95, 4294901760
    %549 = vmatpush1.msra.mxu0 %v548
    %550 = vmatprep.subr.mxu0 0.0
    %v551 = vand.u32 %v94, 4294901760
    %552 = vmatpush1.msra.mxu0 %v551
    %553 = vmatprep.subr.mxu0 0.0
    %554 = vmatpush2.msra.mxu0 0.0
    %555 = vmatprep.subr.mxu0 0.0
    %556 = vmatpush2.msra.mxu0 0.0
    %557 = vmatprep.subr.mxu0 0.0
    %558 = vmatpush2.msra.mxu0 0.0
    %559 = vmatprep.subr.mxu0 0.0
    %560 = vmatpush2.msra.mxu0 0.0
    %561 = vmatprep.subr.mxu0 0.0
    %562 = vmatpush2.msra.mxu0 0.0
    %563 = vmatprep.subr.mxu0 0.0
    %564 = vmatpush2.msra.mxu0 0.0
    %565 = vmatprep.subr.mxu0 0.0
    %566 = vmatpush2.msra.mxu0 0.0
    %567 = vmatprep.subr.mxu0 0.0
    %568 = vmatpush2.msra.mxu0 0.0
    %569 = vmatprep.subr.mxu0 0.0
    %570 = vmatpush2.msra.mxu0 0.0
    %571 = vmatprep.subr.mxu0 0.0
    %572 = vmatpush2.msra.mxu0 0.0
    %573 = vmatprep.subr.mxu0 0.0
    %574 = vmatpush2.msra.mxu0 0.0
    %575 = vmatprep.subr.mxu0 0.0
    %576 = vmatpush2.msra.mxu0 0.0
    %577 = vmatprep.subr.mxu0 0.0
    %578 = vmatpush2.msra.mxu0 0.0
    %579 = vmatprep.subr.mxu0 0.0
    %580 = vmatpush2.msra.mxu0 0.0
    %581 = vmatprep.subr.mxu0 0.0
    %582 = vmatpush2.msra.mxu0 0.0
    %583 = vmatprep.subr.mxu0 0.0
    %584 = vmatpush2.msra.mxu0 0.0
    %585 = vmatprep.mubr.f32.mxu0 0.0
    %v586 = vand.u32 %v110, 4294901760
    %v587 = vsub.f32 %v110, %v586
    %v588 = vand.u32 %v587, 4294901760
    %589 = vmatmul.mubr.f32.gmra.mxu0 %v588
    %v590 = vpop.f32.mrf.mxu0
    %v591 = vadd.f32 %v488, %v590
    %v592 = vpop.f32.mrf.mxu0
    %593 = vmatprep.mubr.f32.mxu0 0.0
    %v594 = vand.u32 %v111, 4294901760
    %v595 = vsub.f32 %v111, %v594
    %v596 = vand.u32 %v595, 4294901760
    %597 = vmatmul.mubr.f32.gmra.mxu0 %v596
    %v598 = vpop.f32.mrf.mxu0
    %v599 = vadd.f32 %v495, %v598
    %v600 = vpop.f32.mrf.mxu0
    %601 = vmatprep.mubr.f32.mxu0 0.0
    %v602 = vand.u32 %v112, 4294901760
    %v603 = vsub.f32 %v112, %v602
    %v604 = vand.u32 %v603, 4294901760
    %605 = vmatmul.mubr.f32.gmra.mxu0 %v604
    %v606 = vpop.f32.mrf.mxu0
    %v607 = vadd.f32 %v502, %v606
    %v608 = vpop.f32.mrf.mxu0
    %609 = vdwg.mxu0
    %610 = vmatprep.subr.mxu0 0.0
    %v611 = vand.u32 %v109, 4294901760
    %v612 = vsub.f32 %v109, %v611
    %v613 = vand.u32 %v612, 4294901760
    %614 = vmatpush1.msra.mxu0 %v613
    %615 = vmatprep.subr.mxu0 0.0
    %v616 = vand.u32 %v108, 4294901760
    %v617 = vsub.f32 %v108, %v616
    %v618 = vand.u32 %v617, 4294901760
    %619 = vmatpush1.msra.mxu0 %v618
    %620 = vmatprep.subr.mxu0 0.0
    %v621 = vand.u32 %v107, 4294901760
    %v622 = vsub.f32 %v107, %v621
    %v623 = vand.u32 %v622, 4294901760
    %624 = vmatpush1.msra.mxu0 %v623
    %625 = vmatprep.subr.mxu0 0.0
    %v626 = vand.u32 %v106, 4294901760
    %v627 = vsub.f32 %v106, %v626
    %v628 = vand.u32 %v627, 4294901760
    %629 = vmatpush1.msra.mxu0 %v628
    %630 = vmatprep.subr.mxu0 0.0
    %v631 = vand.u32 %v105, 4294901760
    %v632 = vsub.f32 %v105, %v631
    %v633 = vand.u32 %v632, 4294901760
    %634 = vmatpush1.msra.mxu0 %v633
    %635 = vmatprep.subr.mxu0 0.0
    %v636 = vand.u32 %v104, 4294901760
    %v637 = vsub.f32 %v104, %v636
    %v638 = vand.u32 %v637, 4294901760
    %639 = vmatpush1.msra.mxu0 %v638
    %640 = vmatprep.subr.mxu0 0.0
    %v641 = vand.u32 %v103, 4294901760
    %v642 = vsub.f32 %v103, %v641
    %v643 = vand.u32 %v642, 4294901760
    %644 = vmatpush1.msra.mxu0 %v643
    %645 = vmatprep.subr.mxu0 0.0
    %v646 = vand.u32 %v102, 4294901760
    %v647 = vsub.f32 %v102, %v646
    %v648 = vand.u32 %v647, 4294901760
    %649 = vmatpush1.msra.mxu0 %v648
    %650 = vmatprep.subr.mxu0 0.0
    %v651 = vand.u32 %v101, 4294901760
    %v652 = vsub.f32 %v101, %v651
    %v653 = vand.u32 %v652, 4294901760
    %654 = vmatpush1.msra.mxu0 %v653
    %655 = vmatprep.subr.mxu0 0.0
    %v656 = vand.u32 %v100, 4294901760
    %v657 = vsub.f32 %v100, %v656
    %v658 = vand.u32 %v657, 4294901760
    %659 = vmatpush1.msra.mxu0 %v658
    %660 = vmatprep.subr.mxu0 0.0
    %v661 = vand.u32 %v99, 4294901760
    %v662 = vsub.f32 %v99, %v661
    %v663 = vand.u32 %v662, 4294901760
    %664 = vmatpush1.msra.mxu0 %v663
    %665 = vmatprep.subr.mxu0 0.0
    %v666 = vand.u32 %v98, 4294901760
    %v667 = vsub.f32 %v98, %v666
    %v668 = vand.u32 %v667, 4294901760
    %669 = vmatpush1.msra.mxu0 %v668
    %670 = vmatprep.subr.mxu0 0.0
    %v671 = vand.u32 %v97, 4294901760
    %v672 = vsub.f32 %v97, %v671
    %v673 = vand.u32 %v672, 4294901760
    %674 = vmatpush1.msra.mxu0 %v673
    %675 = vmatprep.subr.mxu0 0.0
    %v676 = vand.u32 %v96, 4294901760
    %v677 = vsub.f32 %v96, %v676
    %v678 = vand.u32 %v677, 4294901760
    %679 = vmatpush1.msra.mxu0 %v678
    %680 = vmatprep.subr.mxu0 0.0
    %v681 = vand.u32 %v95, 4294901760
    %v682 = vsub.f32 %v95, %v681
    %v683 = vand.u32 %v682, 4294901760
    %684 = vmatpush1.msra.mxu0 %v683
    %685 = vmatprep.subr.mxu0 0.0
    %v686 = vand.u32 %v94, 4294901760
    %v687 = vsub.f32 %v94, %v686
    %v688 = vand.u32 %v687, 4294901760
    %689 = vmatpush1.msra.mxu0 %v688
    %690 = vmatprep.subr.mxu0 0.0
    %691 = vmatpush2.msra.mxu0 0.0
    %692 = vmatprep.subr.mxu0 0.0
    %693 = vmatpush2.msra.mxu0 0.0
    %694 = vmatprep.subr.mxu0 0.0
    %695 = vmatpush2.msra.mxu0 0.0
    %696 = vmatprep.subr.mxu0 0.0
    %697 = vmatpush2.msra.mxu0 0.0
    %698 = vmatprep.subr.mxu0 0.0
    %699 = vmatpush2.msra.mxu0 0.0
    %700 = vmatprep.subr.mxu0 0.0
    %701 = vmatpush2.msra.mxu0 0.0
    %702 = vmatprep.subr.mxu0 0.0
    %703 = vmatpush2.msra.mxu0 0.0
    %704 = vmatprep.subr.mxu0 0.0
    %705 = vmatpush2.msra.mxu0 0.0
    %706 = vmatprep.subr.mxu0 0.0
    %707 = vmatpush2.msra.mxu0 0.0
    %708 = vmatprep.subr.mxu0 0.0
    %709 = vmatpush2.msra.mxu0 0.0
    %710 = vmatprep.subr.mxu0 0.0
    %711 = vmatpush2.msra.mxu0 0.0
    %712 = vmatprep.subr.mxu0 0.0
    %713 = vmatpush2.msra.mxu0 0.0
    %714 = vmatprep.subr.mxu0 0.0
    %715 = vmatpush2.msra.mxu0 0.0
    %716 = vmatprep.subr.mxu0 0.0
    %717 = vmatpush2.msra.mxu0 0.0
    %718 = vmatprep.subr.mxu0 0.0
    %719 = vmatpush2.msra.mxu0 0.0
    %720 = vmatprep.subr.mxu0 0.0
    %721 = vmatpush2.msra.mxu0 0.0
    %722 = vmatprep.mubr.f32.mxu0 0.0
    %v723 = vand.u32 %v110, 4294901760
    %724 = vmatmul.mubr.f32.gmra.mxu0 %v723
    %v725 = vpop.f32.mrf.mxu0
    %v726 = vadd.f32 %v591, %v725
    %v727 = vpop.f32.mrf.mxu0
    %728 = vmatprep.mubr.f32.mxu0 0.0
    %v729 = vand.u32 %v111, 4294901760
    %730 = vmatmul.mubr.f32.gmra.mxu0 %v729
    %v731 = vpop.f32.mrf.mxu0
    %v732 = vadd.f32 %v599, %v731
    %v733 = vpop.f32.mrf.mxu0
    %734 = vmatprep.mubr.f32.mxu0 0.0
    %v735 = vand.u32 %v112, 4294901760
    %736 = vmatmul.mubr.f32.gmra.mxu0 %v735
    %v737 = vpop.f32.mrf.mxu0
    %v738 = vadd.f32 %v607, %v737
    %v739 = vpop.f32.mrf.mxu0
    %740 = vdwg.mxu0
    %741 = vmatprep.subr.mxu0 0.0
    %v742 = vand.u32 %v109, 4294901760
    %743 = vmatpush1.msra.mxu0 %v742
    %744 = vmatprep.subr.mxu0 0.0
    %v745 = vand.u32 %v108, 4294901760
    %746 = vmatpush1.msra.mxu0 %v745
    %747 = vmatprep.subr.mxu0 0.0
    %v748 = vand.u32 %v107, 4294901760
    %749 = vmatpush1.msra.mxu0 %v748
    %750 = vmatprep.subr.mxu0 0.0
    %v751 = vand.u32 %v106, 4294901760
    %752 = vmatpush1.msra.mxu0 %v751
    %753 = vmatprep.subr.mxu0 0.0
    %v754 = vand.u32 %v105, 4294901760
    %755 = vmatpush1.msra.mxu0 %v754
    %756 = vmatprep.subr.mxu0 0.0
    %v757 = vand.u32 %v104, 4294901760
    %758 = vmatpush1.msra.mxu0 %v757
    %759 = vmatprep.subr.mxu0 0.0
    %v760 = vand.u32 %v103, 4294901760
    %761 = vmatpush1.msra.mxu0 %v760
    %762 = vmatprep.subr.mxu0 0.0
    %v763 = vand.u32 %v102, 4294901760
    %764 = vmatpush1.msra.mxu0 %v763
    %765 = vmatprep.subr.mxu0 0.0
    %v766 = vand.u32 %v101, 4294901760
    %767 = vmatpush1.msra.mxu0 %v766
    %768 = vmatprep.subr.mxu0 0.0
    %v769 = vand.u32 %v100, 4294901760
    %770 = vmatpush1.msra.mxu0 %v769
    %771 = vmatprep.subr.mxu0 0.0
    %v772 = vand.u32 %v99, 4294901760
    %773 = vmatpush1.msra.mxu0 %v772
    %774 = vmatprep.subr.mxu0 0.0
    %v775 = vand.u32 %v98, 4294901760
    %776 = vmatpush1.msra.mxu0 %v775
    %777 = vmatprep.subr.mxu0 0.0
    %v778 = vand.u32 %v97, 4294901760
    %779 = vmatpush1.msra.mxu0 %v778
    %780 = vmatprep.subr.mxu0 0.0
    %v781 = vand.u32 %v96, 4294901760
    %782 = vmatpush1.msra.mxu0 %v781
    %783 = vmatprep.subr.mxu0 0.0
    %v784 = vand.u32 %v95, 4294901760
    %785 = vmatpush1.msra.mxu0 %v784
    %786 = vmatprep.subr.mxu0 0.0
    %v787 = vand.u32 %v94, 4294901760
    %788 = vmatpush1.msra.mxu0 %v787
    %789 = vmatprep.subr.mxu0 0.0
    %790 = vmatpush2.msra.mxu0 0.0
    %791 = vmatprep.subr.mxu0 0.0
    %792 = vmatpush2.msra.mxu0 0.0
    %793 = vmatprep.subr.mxu0 0.0
    %794 = vmatpush2.msra.mxu0 0.0
    %795 = vmatprep.subr.mxu0 0.0
    %796 = vmatpush2.msra.mxu0 0.0
    %797 = vmatprep.subr.mxu0 0.0
    %798 = vmatpush2.msra.mxu0 0.0
    %799 = vmatprep.subr.mxu0 0.0
    %800 = vmatpush2.msra.mxu0 0.0
    %801 = vmatprep.subr.mxu0 0.0
    %802 = vmatpush2.msra.mxu0 0.0
    %803 = vmatprep.subr.mxu0 0.0
    %804 = vmatpush2.msra.mxu0 0.0
    %805 = vmatprep.subr.mxu0 0.0
    %806 = vmatpush2.msra.mxu0 0.0
    %807 = vmatprep.subr.mxu0 0.0
    %808 = vmatpush2.msra.mxu0 0.0
    %809 = vmatprep.subr.mxu0 0.0
    %810 = vmatpush2.msra.mxu0 0.0
    %811 = vmatprep.subr.mxu0 0.0
    %812 = vmatpush2.msra.mxu0 0.0
    %813 = vmatprep.subr.mxu0 0.0
    %814 = vmatpush2.msra.mxu0 0.0
    %815 = vmatprep.subr.mxu0 0.0
    %816 = vmatpush2.msra.mxu0 0.0
    %817 = vmatprep.subr.mxu0 0.0
    %818 = vmatpush2.msra.mxu0 0.0
    %819 = vmatprep.subr.mxu0 0.0
    %820 = vmatpush2.msra.mxu0 0.0
    %821 = vmatprep.mubr.f32.mxu0 0.0
    %v822 = vand.u32 %v110, 4294901760
    %823 = vmatmul.mubr.f32.gmra.mxu0 %v822
    %v824 = vpop.f32.mrf.mxu0
    %v825 = vadd.f32 %v726, %v824
    %v826 = vpop.f32.mrf.mxu0
    %827 = vmatprep.mubr.f32.mxu0 0.0
    %v828 = vand.u32 %v111, 4294901760
    %829 = vmatmul.mubr.f32.gmra.mxu0 %v828
    %v830 = vpop.f32.mrf.mxu0
    %v831 = vadd.f32 %v732, %v830
    %v832 = vpop.f32.mrf.mxu0
    %833 = vmatprep.mubr.f32.mxu0 0.0
    %v834 = vand.u32 %v112, 4294901760
    %835 = vmatmul.mubr.f32.gmra.mxu0 %v834
    %v836 = vpop.f32.mrf.mxu0
    %v837 = vadd.f32 %v738, %v836
    %v838 = vpop.f32.mrf.mxu0
    %839 = vdwg.mxu0
    %v840 = vlaneseq
    %v841 = vshrl.u32 %v840, 7
    %v842 = vsub.s32 0, %v841
    %v843 = vrot.slane %v39, %v842
    %vm844 = vcmp.eq.s32.totalorder %v843, %v42
    %vm845 = vcmp.eq.s32.totalorder %v843, %v43
    %vm846 = vcmp.eq.s32.totalorder %v843, %v44
    %v847 = vsel %vm844, %v825, 0.0
    %v848 = vsel %vm845, %v831, 0.0
    %v849 = vsel %vm846, %v837, 0.0
    %v850 = vadd.f32 %v847, %v848
    %v851 = vadd.f32 %v850, %v849
    %v852 = vrot.slane %v851, 4
    %v853 = vadd.f32 %v851, %v852
    %v854 = vrot.slane %v853, 2
    %v855 = vadd.f32 %v853, %v854
    %v856 = vrot.slane %v855, 1
    %v857 = vadd.f32 %v855, %v856
    %v858 = vlaneseq
    %v859 = vshrl.u32 %v858, 7
    %v860 = vsub.s32 0, %v859
    %v861 = vrot.slane %v40, %v860
    %vm862 = vcmp.eq.s32.totalorder %v861, %v42
    %vm863 = vcmp.eq.s32.totalorder %v861, %v43
    %vm864 = vcmp.eq.s32.totalorder %v861, %v44
    %v865 = vsel %vm862, %v825, 0.0
    %v866 = vsel %vm863, %v831, 0.0
    %v867 = vsel %vm864, %v837, 0.0
    %v868 = vadd.f32 %v865, %v866
    %v869 = vadd.f32 %v868, %v867
    %v870 = vrot.slane %v869, 4
    %v871 = vadd.f32 %v869, %v870
    %v872 = vrot.slane %v871, 2
    %v873 = vadd.f32 %v871, %v872
    %v874 = vrot.slane %v873, 1
    %v875 = vadd.f32 %v873, %v874
    %v876 = vadd.f32 %v857, %v875
    %v877 = vmul.f32 %v876, 0.5
    %v878 = vadd.f32 %v837, %v877
    %879 = vst [vmem:[#allocation7] sm:$0x1] %v878
    %880 = vst [vmem:[#allocation7 + $0x1] sm:$0x1] %v857
    %881 = vst [vmem:[#allocation7 + $0x2] sm:$0x1] %v875
    %882 = vst [vmem:[#allocation7 + $0x3] sm:$0x1f] 0.0
    // Predicated region
    $region18: #{tpu_custom_call.1} parent=1 // pred_check
      _
    $region19: #{tpu_custom_call.1} parent=1 // pred_check_branch
      %884 = sbr.rel (0) target = $region21
    $region20: #{tpu_custom_call.1} parent=1 // pred_region
      %s886 = ssub.s32 128, 128
      %887 = vsyncadd [#allocation4], %s886
      %s889 = sshll.u32 [#allocation7], 4
      %s890 = int_to_ptr.vmem [resolvable:$true] %s889
      %892 = dma.vmem_to_hbm [thread:$0]  %s890, 128, %s2, [#allocation4]
    $region21: #{tpu_custom_call.1} parent=1 // pred_fallthru
      _
    // Predicated region
    $region22: #{tpu_custom_call.1} parent=1 // pred_check
      _
    $region23: #{tpu_custom_call.1} parent=1 // pred_check_branch
      %894 = sbr.rel (0) target = $region25
    $region24: #{tpu_custom_call.1} parent=1 // pred_region
      %895 = dma.done [#allocation4], 128
    $region25: #{tpu_custom_call.1} parent=1 // pred_fallthru
      _
    %896 = vsyncpa [#allocation3], 1
    %897 = vsyncpa [#allocation6], 1
    %898 = vsyncpa [#allocation4], 1

</llo_original>
